<compile_context>
chip_gen: v7x
topology: tpu7x:2x2x1
jax: 0.10.0
libtpu: 0.0.40
codegen_flags: <defaults>
</compile_context>

<pallas_src>
import functools

import jax
import jax.numpy as jnp
from jax.experimental import pallas as pl
from jax.experimental.pallas import tpu as pltpu

SUBLANE = 8


def _cdiv(a, b):
    return (a + b - 1) // b


def _round_up(n, m):
    return ((n + m - 1) // m) * m


def mlp_kernel(x_ref, w1_ref, b1_ref, w2_ref, b2_ref, w3_ref, b3_ref, o_ref,
               *, input_dim):
    """One batch tile: relu(x@W1+b1) -> relu(.@W2+b2) -> .@W3+b3.

    x_ref : (Tb, input_dim)           natural (unpadded) input tile
    w1_ref: (input_dim, H)   b1_ref: (1, H)
    w2_ref: (H, H)           b2_ref: (1, H)
    w3_ref: (H, out_dim)     b3_ref: (1, out_dim)
    o_ref : (Tb, out_dim)             natural (unpadded) output tile
    """
    x = x_ref[...]
    w1 = w1_ref[...]

    # fc1: contraction K == input_dim (tiny) -> VPU outer-product accumulation
    # seeded with the bias (no zeros init, no extra add), instead of a
    # <2%-utilized padded MXU contraction.
    acc = b1_ref[...]                               # (1, H): broadcasts on first add
    for k in range(input_dim):                      # static unroll; input_dim small
        acc = acc + x[:, k:k + 1] * w1[k:k + 1, :]
    h = jnp.maximum(acc, 0.0)

    # fc2: H x H matmul on the MXU with f32 accumulation.
    h = jnp.dot(h, w2_ref[...], preferred_element_type=jnp.float32) + b2_ref[...]
    h = jnp.maximum(h, 0.0)

    # fc3: small-N MXU matmul; output kept at its natural width so the wrapper
    # does no pad/slice HBM passes.
    o = jnp.dot(h, w3_ref[...], preferred_element_type=jnp.float32) + b3_ref[...]
    o_ref[...] = o.astype(o_ref.dtype)


def mlp_forward(x, params, *, max_block_b=4096):
    """x: [B, input_dim] float32. params: dict of w1,b1,w2,b2,w3,b3."""
    w1, b1, w2, b2, w3, b3 = (params[k] for k in ("w1", "b1", "w2", "b2", "w3", "b3"))
    B, input_dim = x.shape
    out_dim = w3.shape[1]

    # Batch tiling: amortize the ~0.35 us per-grid-step cost with large tiles,
    # balance tile size across the grid (tail padding < one sublane-multiple
    # per tile), and keep >= 2 steps once B >= 16 so v7x megacore has work for
    # both TensorCores.
    n_steps = _cdiv(B, max_block_b)
    if B >= 16:
        n_steps = max(n_steps, 2)
    tb = _round_up(_cdiv(B, n_steps), SUBLANE)
    b_pad = _round_up(B, tb)

    # Only pad batch rows (never lanes); skip the pad entirely when B divides.
    x_in = x if b_pad == B else jnp.zeros((b_pad, input_dim), x.dtype).at[:B].set(x)

    # Weights/biases: constant index_map -> DMA'd once, VMEM-resident across
    # all grid steps (~18 KiB f32 total).
    const = lambda a: pl.BlockSpec(a.shape, lambda i: (0, 0))

    out = pl.pallas_call(
        functools.partial(mlp_kernel, input_dim=input_dim),
        out_shape=jax.ShapeDtypeStruct((b_pad, out_dim), x.dtype),
        grid=(b_pad // tb,),
        in_specs=[
            pl.BlockSpec((tb, input_dim), lambda i: (i, 0)),   # x tiled over batch
            const(w1), const(b1),
            const(w2), const(b2),
            const(w3), const(b3),
        ],
        out_specs=pl.BlockSpec((tb, out_dim), lambda i: (i, 0)),
        compiler_params=pltpu.CompilerParams(
            # Independent batch tiles -> megacore sharding on v7x (no-op on
            # single-TC v5e/v6e). Footprint is a few MiB even at tb=4096, so
            # the default scoped VMEM limit is ample (no override needed).
            dimension_semantics=("parallel",),
        ),
    )(x_in, w1, b1, w2, b2, w3, b3)
    return out if b_pad == B else out[:B]


def init_params(key, input_dim=2, hidden_dim=64, output_dim=2):
    """Deterministic init mimicking nn.Linear default (uniform +/- 1/sqrt(fan_in))."""
    ks = jax.random.split(key, 6)

    def lin(kw, kb, fan_in, fan_out):
        bound = 1.0 / jnp.sqrt(fan_in)
        w = jax.random.uniform(kw, (fan_in, fan_out), jnp.float32, -bound, bound)
        b = jax.random.uniform(kb, (1, fan_out), jnp.float32, -bound, bound)
        return w, b

    w1, b1 = lin(ks[0], ks[1], input_dim, hidden_dim)
    w2, b2 = lin(ks[2], ks[3], hidden_dim, hidden_dim)
    w3, b3 = lin(ks[4], ks[5], hidden_dim, output_dim)
    return {"w1": w1, "b1": b1, "w2": w2, "b2": b2, "w3": w3, "b3": b3}


def mlp_reference(x, p):
    h = jnp.maximum(x @ p["w1"] + p["b1"], 0.0)
    h = jnp.maximum(h @ p["w2"] + p["b2"], 0.0)
    return h @ p["w3"] + p["b3"]


# TODO(synk): ModelFreezeMixin.freeze()/unfreeze() toggle requires_grad only;
# no forward-pass equivalent to translate.

if __name__ == "__main__":
    key = jax.random.PRNGKey(0)
    kx, kp, kx2 = jax.random.split(key, 3)

    input_dim, hidden_dim, output_dim = 2, 64, 2
    params = init_params(kp, input_dim, hidden_dim, output_dim)

    # Small single-tile case (module defaults).
    x = jax.random.normal(kx, (8, input_dim), jnp.float32)
    out = jax.block_until_ready(mlp_forward(x, params))
    ref = mlp_reference(x, params)
    assert out.shape == (8, output_dim)
    assert jnp.allclose(out, ref, atol=1e-5, rtol=1e-5), "mismatch vs reference (B=8)"

    # Multi-tile case exercising batch-row padding and the >=2-step grid.
    x2 = jax.random.normal(kx2, (200, input_dim), jnp.float32)
    out2 = jax.block_until_ready(mlp_forward(x2, params))
    ref2 = mlp_reference(x2, params)
    assert out2.shape == (200, output_dim)
    assert jnp.allclose(out2, ref2, atol=1e-5, rtol=1e-5), "mismatch vs reference (B=200)"

    print("KERNEL_OK")
</pallas_src>

<mosaic_0001>
module attributes {stable_mosaic.version = 11 : i64} {
  func.func @mlp_kernel(%arg0: i32, %arg1: memref<8x2xf32, #tpu.memory_space<vmem>>, %arg2: memref<2x64xf32, #tpu.memory_space<vmem>>, %arg3: memref<1x64xf32, #tpu.memory_space<vmem>>, %arg4: memref<64x64xf32, #tpu.memory_space<vmem>>, %arg5: memref<1x64xf32, #tpu.memory_space<vmem>>, %arg6: memref<64x2xf32, #tpu.memory_space<vmem>>, %arg7: memref<1x2xf32, #tpu.memory_space<vmem>>, %arg8: memref<8x2xf32, #tpu.memory_space<vmem>>) attributes {dimension_semantics = [#tpu.dimension_semantics<parallel>], iteration_bounds = array<i64: 1>, scalar_prefetch = 0 : i64, scratch_operands = 0 : i64, tpu.core_type = #tpu.core_type<tc>, window_params = [{transform_indices = @transform_0, window_bounds = array<i64: 8, 2>}, {pipeline_mode = #tpu.pipeline_mode<synchronous>, transform_indices = @transform_1, window_bounds = array<i64: 2, 64>}, {pipeline_mode = #tpu.pipeline_mode<synchronous>, transform_indices = @transform_2, window_bounds = array<i64: 1, 64>}, {pipeline_mode = #tpu.pipeline_mode<synchronous>, transform_indices = @transform_3, window_bounds = array<i64: 64, 64>}, {pipeline_mode = #tpu.pipeline_mode<synchronous>, transform_indices = @transform_4, window_bounds = array<i64: 1, 64>}, {pipeline_mode = #tpu.pipeline_mode<synchronous>, transform_indices = @transform_5, window_bounds = array<i64: 64, 2>}, {pipeline_mode = #tpu.pipeline_mode<synchronous>, transform_indices = @transform_6, window_bounds = array<i64: 1, 2>}, {transform_indices = @transform_7, window_bounds = array<i64: 8, 2>}]} {
    %c0 = arith.constant 0 : index
    %c0_0 = arith.constant 0 : index
    %0 = vector.load %arg1[%c0, %c0_0] : memref<8x2xf32, #tpu.memory_space<vmem>>, vector<8x2xf32>
    %c0_1 = arith.constant 0 : index
    %c0_2 = arith.constant 0 : index
    %1 = vector.load %arg2[%c0_1, %c0_2] : memref<2x64xf32, #tpu.memory_space<vmem>>, vector<2x64xf32>
    %c0_3 = arith.constant 0 : index
    %c0_4 = arith.constant 0 : index
    %2 = vector.load %arg3[%c0_3, %c0_4] : memref<1x64xf32, #tpu.memory_space<vmem>>, vector<1x64xf32>
    %3 = vector.extract_strided_slice %0 {offsets = [0, 0], sizes = [8, 1], strides = [1, 1]} : vector<8x2xf32> to vector<8x1xf32>
    %4 = vector.extract_strided_slice %1 {offsets = [0, 0], sizes = [1, 64], strides = [1, 1]} : vector<2x64xf32> to vector<1x64xf32>
    %5 = vector.broadcast %3 : vector<8x1xf32> to vector<8x64xf32>
    %6 = vector.broadcast %4 : vector<1x64xf32> to vector<8x64xf32>
    %7 = arith.mulf %5, %6 : vector<8x64xf32>
    %8 = vector.broadcast %2 : vector<1x64xf32> to vector<8x64xf32>
    %9 = arith.addf %8, %7 : vector<8x64xf32>
    %10 = vector.extract_strided_slice %0 {offsets = [0, 1], sizes = [8, 1], strides = [1, 1]} : vector<8x2xf32> to vector<8x1xf32>
    %11 = vector.extract_strided_slice %1 {offsets = [1, 0], sizes = [1, 64], strides = [1, 1]} : vector<2x64xf32> to vector<1x64xf32>
    %12 = vector.broadcast %10 : vector<8x1xf32> to vector<8x64xf32>
    %13 = vector.broadcast %11 : vector<1x64xf32> to vector<8x64xf32>
    %14 = arith.mulf %12, %13 : vector<8x64xf32>
    %15 = arith.addf %9, %14 : vector<8x64xf32>
    %cst = arith.constant 0.000000e+00 : f32
    %16 = vector.broadcast %cst : f32 to vector<8x64xf32>
    %17 = arith.maximumf %15, %16 : vector<8x64xf32>
    %c0_5 = arith.constant 0 : index
    %c0_6 = arith.constant 0 : index
    %18 = vector.load %arg4[%c0_5, %c0_6] : memref<64x64xf32, #tpu.memory_space<vmem>>, vector<64x64xf32>
    %cst_7 = arith.constant dense<0.000000e+00> : vector<8x64xf32>
    %19 = tpu.matmul %17, %18, %cst_7 {dimension_numbers = #tpu.dot_dimension_numbers<[1], [0], [0], [1], [0, 0, 1, 1], [], []>} : vector<8x64xf32>, vector<64x64xf32>, vector<8x64xf32> -> vector<8x64xf32>
    %c0_8 = arith.constant 0 : index
    %c0_9 = arith.constant 0 : index
    %20 = vector.load %arg5[%c0_8, %c0_9] : memref<1x64xf32, #tpu.memory_space<vmem>>, vector<1x64xf32>
    %21 = vector.broadcast %20 : vector<1x64xf32> to vector<8x64xf32>
    %22 = arith.addf %19, %21 : vector<8x64xf32>
    %cst_10 = arith.constant 0.000000e+00 : f32
    %23 = vector.broadcast %cst_10 : f32 to vector<8x64xf32>
    %24 = arith.maximumf %22, %23 : vector<8x64xf32>
    %c0_11 = arith.constant 0 : index
    %c0_12 = arith.constant 0 : index
    %25 = vector.load %arg6[%c0_11, %c0_12] : memref<64x2xf32, #tpu.memory_space<vmem>>, vector<64x2xf32>
    %cst_13 = arith.constant dense<0.000000e+00> : vector<8x2xf32>
    %26 = tpu.matmul %24, %25, %cst_13 {dimension_numbers = #tpu.dot_dimension_numbers<[1], [0], [0], [1], [0, 0, 1, 1], [], []>} : vector<8x64xf32>, vector<64x2xf32>, vector<8x2xf32> -> vector<8x2xf32>
    %c0_14 = arith.constant 0 : index
    %c0_15 = arith.constant 0 : index
    %27 = vector.load %arg7[%c0_14, %c0_15] : memref<1x2xf32, #tpu.memory_space<vmem>>, vector<1x2xf32>
    %28 = vector.broadcast %27 : vector<1x2xf32> to vector<8x2xf32>
    %29 = arith.addf %26, %28 : vector<8x2xf32>
    %c0_16 = arith.constant 0 : index
    %c0_17 = arith.constant 0 : index
    %30 = vector.load %arg8[%c0_16, %c0_17] : memref<8x2xf32, #tpu.memory_space<vmem>>, vector<8x2xf32>
    tpu.vector_store %arg8[%c0_16, %c0_17], %29 {strides = array<i32>} : memref<8x2xf32, #tpu.memory_space<vmem>>, vector<8x2xf32>,
    return
  }
  func.func @transform_0(%arg0: i32) -> (i32, i32) {
    %c0_i32 = arith.constant 0 : i32
    %c0_i32_0 = arith.constant 0 : i32
    return %arg0, %c0_i32 : i32, i32
  }
  func.func @transform_1(%arg0: i32) -> (i32, i32) {
    %c0_i32 = arith.constant 0 : i32
    %c0_i32_0 = arith.constant 0 : i32
    %c0_i32_1 = arith.constant 0 : i32
    return %c0_i32, %c0_i32_0 : i32, i32
  }
  func.func @transform_2(%arg0: i32) -> (i32, i32) {
    %c0_i32 = arith.constant 0 : i32
    %c0_i32_0 = arith.constant 0 : i32
    %c0_i32_1 = arith.constant 0 : i32
    return %c0_i32, %c0_i32_0 : i32, i32
  }
  func.func @transform_3(%arg0: i32) -> (i32, i32) {
    %c0_i32 = arith.constant 0 : i32
    %c0_i32_0 = arith.constant 0 : i32
    %c0_i32_1 = arith.constant 0 : i32
    return %c0_i32, %c0_i32_0 : i32, i32
  }
  func.func @transform_4(%arg0: i32) -> (i32, i32) {
    %c0_i32 = arith.constant 0 : i32
    %c0_i32_0 = arith.constant 0 : i32
    %c0_i32_1 = arith.constant 0 : i32
    return %c0_i32, %c0_i32_0 : i32, i32
  }
  func.func @transform_5(%arg0: i32) -> (i32, i32) {
    %c0_i32 = arith.constant 0 : i32
    %c0_i32_0 = arith.constant 0 : i32
    %c0_i32_1 = arith.constant 0 : i32
    return %c0_i32, %c0_i32_0 : i32, i32
  }
  func.func @transform_6(%arg0: i32) -> (i32, i32) {
    %c0_i32 = arith.constant 0 : i32
    %c0_i32_0 = arith.constant 0 : i32
    %c0_i32_1 = arith.constant 0 : i32
    return %c0_i32, %c0_i32_0 : i32, i32
  }
  func.func @transform_7(%arg0: i32) -> (i32, i32) {
    %c0_i32 = arith.constant 0 : i32
    %c0_i32_0 = arith.constant 0 : i32
    return %arg0, %c0_i32 : i32, i32
  }
}

</mosaic_0001>

<llo_original>
// kernel: tpu_custom_call.1
$region0: #{tpu_custom_call.1}
  #allocation0 [shape = 'u32[]', space=smem, size = 0x4, offset = 0x4, fixed_abs, tag = 'smem constant byte address 0x4 - core index']
  #allocation1 [shape = 'u32[144,128]{1,0:T(1,128)}', space=vmem, size = 0x12000, scoped, tag = 'internal scratch']
  %s0 = inlined_call_operand.vmem [shape: f32[8,2], index: 0, kind: input, shape index: {}]
  %s1 = inlined_call_operand.vmem [shape: f32[2,64], index: 1, kind: input, shape index: {}]
  %s2 = inlined_call_operand.vmem [shape: f32[1,64], index: 2, kind: input, shape index: {}]
  %s3 = inlined_call_operand.vmem [shape: f32[64,64], index: 3, kind: input, shape index: {}]
  %s4 = inlined_call_operand.vmem [shape: f32[1,64], index: 4, kind: input, shape index: {}]
  %s5 = inlined_call_operand.vmem [shape: f32[64,2], index: 5, kind: input, shape index: {}]
  %s6 = inlined_call_operand.vmem [shape: f32[1,2], index: 6, kind: input, shape index: {}]
  %s7 = inlined_call_operand.vmem [shape: f32[8,2], index: 7, kind: output, shape index: {}]
  %s8 = sld [smem:[#allocation0]]
  $region38: #{tpu_custom_call.1} parent=0
    _
  %s10 = ssub.s32 1, %s8
  %s11 = scalar_select 0, %s10, %s8
  // Predicated region
  $region2: #{tpu_custom_call.1} parent=0 // pred_check
    _
  $region3: #{tpu_custom_call.1} parent=0 // pred_check_branch
    %13 = sbr.rel (0) target = $region5
  $region4: #{tpu_custom_call.1} parent=0 // pred_region
    _
  $region5: #{tpu_custom_call.1} parent=0 // pred_fallthru
    _
  // Predicated region
  $region6: #{tpu_custom_call.1} parent=0 // pred_check
    _
  $region7: #{tpu_custom_call.1} parent=0 // pred_check_branch
    %15 = sbr.rel (0) target = $region9
  $region8: #{tpu_custom_call.1} parent=0 // pred_region
    _
  $region9: #{tpu_custom_call.1} parent=0 // pred_fallthru
    _
  // Predicated region
  $region10: #{tpu_custom_call.1} parent=0 // pred_check
    _
  $region11: #{tpu_custom_call.1} parent=0 // pred_check_branch
    %17 = sbr.rel (0) target = $region13
  $region12: #{tpu_custom_call.1} parent=0 // pred_region
    _
  $region13: #{tpu_custom_call.1} parent=0 // pred_fallthru
    _
  // Predicated region
  $region14: #{tpu_custom_call.1} parent=0 // pred_check
    _
  $region15: #{tpu_custom_call.1} parent=0 // pred_check_branch
    %19 = sbr.rel (0) target = $region17
  $region16: #{tpu_custom_call.1} parent=0 // pred_region
    _
  $region17: #{tpu_custom_call.1} parent=0 // pred_fallthru
    _
  // Predicated region
  $region18: #{tpu_custom_call.1} parent=0 // pred_check
    _
  $region19: #{tpu_custom_call.1} parent=0 // pred_check_branch
    %21 = sbr.rel (0) target = $region21
  $region20: #{tpu_custom_call.1} parent=0 // pred_region
    _
  $region21: #{tpu_custom_call.1} parent=0 // pred_fallthru
    _
  // Predicated region
  $region22: #{tpu_custom_call.1} parent=0 // pred_check
    _
  $region23: #{tpu_custom_call.1} parent=0 // pred_check_branch
    %23 = sbr.rel (0) target = $region25
  $region24: #{tpu_custom_call.1} parent=0 // pred_region
    _
  $region25: #{tpu_custom_call.1} parent=0 // pred_fallthru
    _
  // Predicated region
  $region26: #{tpu_custom_call.1} parent=0 // pred_check
    _
  $region27: #{tpu_custom_call.1} parent=0 // pred_check_branch
    %25 = sbr.rel (0) target = $region29
  $region28: #{tpu_custom_call.1} parent=0 // pred_region
    _
  $region29: #{tpu_custom_call.1} parent=0 // pred_fallthru
    _
  %v26 = vld [vmem:[%s0] sm:$0xff]
  %v27 = vld [vmem:[%s1] sm:$0x3]
  %v28 = vld [vmem:[%s2] sm:$0x1]
  %30 = vset.pattern.permute.xlu0 0
  %31 = vperm.xlu0 %30, %v26
  %v32 = vpop.permute.xlu0 %31
  %v34 = vlaneseq
  %v35 = vshrl.u32 %v34, 7
  %v36 = vsub.s32 0, %v35
  %v37 = vrot.slane %v27, %v36
  %v38 = vmul.f32 %v32, %v37
  %v40 = vlaneseq
  %v41 = vshrl.u32 %v40, 7
  %v42 = vsub.s32 0, %v41
  %v43 = vrot.slane %v28, %v42
  %v45 = vadd.f32 %v43, %v38
  %46 = vset.pattern.permute.xlu0 1
  %47 = vperm.xlu0 %46, %v26
  %v48 = vpop.permute.xlu0 %47
  %v50 = vlaneseq
  %v51 = vshrl.u32 %v50, 7
  %v52 = vsub.s32 1, %v51
  %v53 = vrot.slane %v27, %v52
  %v54 = vmul.f32 %v48, %v53
  %v55 = vadd.f32 %v45, %v54
  %v56 = vmax.f32 %v55, 0.0
  %v57 = vld [vmem:[%s3] sm:$0xff]
  %v58 = vld [vmem:[%s3 + $0x8] sm:$0xff]
  %v59 = vld [vmem:[%s3 + $0x10] sm:$0xff]
  %v60 = vld [vmem:[%s3 + $0x18] sm:$0xff]
  %v61 = vld [vmem:[%s3 + $0x20] sm:$0xff]
  %v62 = vld [vmem:[%s3 + $0x28] sm:$0xff]
  %v63 = vld [vmem:[%s3 + $0x30] sm:$0xff]
  %v64 = vld [vmem:[%s3 + $0x38] sm:$0xff]
  %v65 = vld [vmem:[%s4] sm:$0x1]
  %v67 = vlaneseq
  %v68 = vshrl.u32 %v67, 7
  %v69 = vsub.s32 0, %v68
  %v70 = vrot.slane %v65, %v69
  %vm72 = vcmask 523264
  %v74 = vsel %vm72, %v56, 0
  %76 = vmatprep.subr.mxu0 0.0
  %77 = vmatpush1.msra.mxu0 %v57
  %78 = vmatprep.subr.mxu0 0.0
  %79 = vmatpush1.msra.mxu0 %v58
  %80 = vmatprep.subr.mxu0 0.0
  %81 = vmatpush1.msra.mxu0 %v59
  %82 = vmatprep.subr.mxu0 0.0
  %83 = vmatpush1.msra.mxu0 %v60
  %84 = vmatprep.subr.mxu0 0.0
  %85 = vmatpush1.msra.mxu0 %v61
  %86 = vmatprep.subr.mxu0 0.0
  %87 = vmatpush1.msra.mxu0 %v62
  %88 = vmatprep.subr.mxu0 0.0
  %89 = vmatpush1.msra.mxu0 %v63
  %90 = vmatprep.subr.mxu0 0.0
  %91 = vmatpush1.msra.mxu0 %v64
  %92 = vmatprep.subr.mxu0 0.0
  %93 = vmatpush1.msra.mxu0 0.0
  %94 = vmatprep.subr.mxu0 0.0
  %95 = vmatpush1.msra.mxu0 0.0
  %96 = vmatprep.subr.mxu0 0.0
  %97 = vmatpush1.msra.mxu0 0.0
  %98 = vmatprep.subr.mxu0 0.0
  %99 = vmatpush1.msra.mxu0 0.0
  %100 = vmatprep.subr.mxu0 0.0
  %101 = vmatpush1.msra.mxu0 0.0
  %102 = vmatprep.subr.mxu0 0.0
  %103 = vmatpush1.msra.mxu0 0.0
  %104 = vmatprep.subr.mxu0 0.0
  %105 = vmatpush1.msra.mxu0 0.0
  %106 = vmatprep.subr.mxu0 0.0
  %107 = vmatpush1.msra.mxu0 0.0
  %108 = vmatprep.subr.mxu0 0.0
  %109 = vmatpush1.msra.mxu0 0.0
  %110 = vmatprep.subr.mxu0 0.0
  %111 = vmatpush1.msra.mxu0 0.0
  %112 = vmatprep.subr.mxu0 0.0
  %113 = vmatpush1.msra.mxu0 0.0
  %114 = vmatprep.subr.mxu0 0.0
  %115 = vmatpush1.msra.mxu0 0.0
  %116 = vmatprep.subr.mxu0 0.0
  %117 = vmatpush1.msra.mxu0 0.0
  %118 = vmatprep.subr.mxu0 0.0
  %119 = vmatpush1.msra.mxu0 0.0
  %120 = vmatprep.subr.mxu0 0.0
  %121 = vmatpush1.msra.mxu0 0.0
  %122 = vmatprep.subr.mxu0 0.0
  %123 = vmatpush1.msra.mxu0 0.0
  %124 = vmatprep.subr.mxu0 0.0
  %125 = vmatpush1.msra.mxu0 0.0
  %126 = vmatprep.subr.mxu0 0.0
  %127 = vmatpush1.msra.mxu0 0.0
  %128 = vmatprep.subr.mxu0 0.0
  %129 = vmatpush1.msra.mxu0 0.0
  %130 = vmatprep.subr.mxu0 0.0
  %131 = vmatpush1.msra.mxu0 0.0
  %132 = vmatprep.subr.mxu0 0.0
  %133 = vmatpush1.msra.mxu0 0.0
  %134 = vmatprep.subr.mxu0 0.0
  %135 = vmatpush1.msra.mxu0 0.0
  %136 = vmatprep.subr.mxu0 0.0
  %137 = vmatpush1.msra.mxu0 0.0
  %138 = vmatprep.subr.mxu0 0.0
  %139 = vmatpush1.msra.mxu0 0.0
  %140 = vmatprep.mubr.f32.mxu0 0.0
  %141 = vmatmul.mubr.f32.gmra.mrb[0].mxu0 %v74
  %v142 = vpop.f32.mrb[0].mxu0
  %v143 = vadd.f32 %v70, %v142
  %v144 = vpop.f32.mrb[0].mxu0
  %145 = vdwg.mxu0
  %v146 = vmax.f32 %v143, 0.0
  %v147 = vld [vmem:[%s5] sm:$0xff]
  %v148 = vld [vmem:[%s5 + $0x8] sm:$0xff]
  %v149 = vld [vmem:[%s5 + $0x10] sm:$0xff]
  %v150 = vld [vmem:[%s5 + $0x18] sm:$0xff]
  %v151 = vld [vmem:[%s5 + $0x20] sm:$0xff]
  %v152 = vld [vmem:[%s5 + $0x28] sm:$0xff]
  %v153 = vld [vmem:[%s5 + $0x30] sm:$0xff]
  %v154 = vld [vmem:[%s5 + $0x38] sm:$0xff]
  %v155 = vld [vmem:[%s6] sm:$0x1]
  %v157 = vlaneseq
  %v158 = vshrl.u32 %v157, 7
  %v159 = vsub.s32 0, %v158
  %v160 = vrot.slane %v155, %v159
  %v163 = vsel %vm72, %v146, 0
  %165 = vmatprep.subr.mxu0 0.0
  %166 = vmatpush1.msra.mxu0 %v147
  %167 = vmatprep.subr.mxu0 0.0
  %168 = vmatpush1.msra.mxu0 %v148
  %169 = vmatprep.subr.mxu0 0.0
  %170 = vmatpush1.msra.mxu0 %v149
  %171 = vmatprep.subr.mxu0 0.0
  %172 = vmatpush1.msra.mxu0 %v150
  %173 = vmatprep.subr.mxu0 0.0
  %174 = vmatpush1.msra.mxu0 %v151
  %175 = vmatprep.subr.mxu0 0.0
  %176 = vmatpush1.msra.mxu0 %v152
  %177 = vmatprep.subr.mxu0 0.0
  %178 = vmatpush1.msra.mxu0 %v153
  %179 = vmatprep.subr.mxu0 0.0
  %180 = vmatpush1.msra.mxu0 %v154
  %181 = vmatprep.subr.mxu0 0.0
  %182 = vmatpush1.msra.mxu0 0.0
  %183 = vmatprep.subr.mxu0 0.0
  %184 = vmatpush1.msra.mxu0 0.0
  %185 = vmatprep.subr.mxu0 0.0
  %186 = vmatpush1.msra.mxu0 0.0
  %187 = vmatprep.subr.mxu0 0.0
  %188 = vmatpush1.msra.mxu0 0.0
  %189 = vmatprep.subr.mxu0 0.0
  %190 = vmatpush1.msra.mxu0 0.0
  %191 = vmatprep.subr.mxu0 0.0
  %192 = vmatpush1.msra.mxu0 0.0
  %193 = vmatprep.subr.mxu0 0.0
  %194 = vmatpush1.msra.mxu0 0.0
  %195 = vmatprep.subr.mxu0 0.0
  %196 = vmatpush1.msra.mxu0 0.0
  %197 = vmatprep.subr.mxu0 0.0
  %198 = vmatpush1.msra.mxu0 0.0
  %199 = vmatprep.subr.mxu0 0.0
  %200 = vmatpush1.msra.mxu0 0.0
  %201 = vmatprep.subr.mxu0 0.0
  %202 = vmatpush1.msra.mxu0 0.0
  %203 = vmatprep.subr.mxu0 0.0
  %204 = vmatpush1.msra.mxu0 0.0
  %205 = vmatprep.subr.mxu0 0.0
  %206 = vmatpush1.msra.mxu0 0.0
  %207 = vmatprep.subr.mxu0 0.0
  %208 = vmatpush1.msra.mxu0 0.0
  %209 = vmatprep.subr.mxu0 0.0
  %210 = vmatpush1.msra.mxu0 0.0
  %211 = vmatprep.subr.mxu0 0.0
  %212 = vmatpush1.msra.mxu0 0.0
  %213 = vmatprep.subr.mxu0 0.0
  %214 = vmatpush1.msra.mxu0 0.0
  %215 = vmatprep.subr.mxu0 0.0
  %216 = vmatpush1.msra.mxu0 0.0
  %217 = vmatprep.subr.mxu0 0.0
  %218 = vmatpush1.msra.mxu0 0.0
  %219 = vmatprep.subr.mxu0 0.0
  %220 = vmatpush1.msra.mxu0 0.0
  %221 = vmatprep.subr.mxu0 0.0
  %222 = vmatpush1.msra.mxu0 0.0
  %223 = vmatprep.subr.mxu0 0.0
  %224 = vmatpush1.msra.mxu0 0.0
  %225 = vmatprep.subr.mxu0 0.0
  %226 = vmatpush1.msra.mxu0 0.0
  %227 = vmatprep.subr.mxu0 0.0
  %228 = vmatpush1.msra.mxu0 0.0
  %229 = vmatprep.mubr.f32.mxu0 0.0
  %230 = vmatmul.mubr.f32.gmra.mrb[0].mxu0 %v163
  %v231 = vpop.f32.mrb[0].mxu0
  %v232 = vadd.f32 %v160, %v231
  %v233 = vpop.f32.mrb[0].mxu0
  %234 = vdwg.mxu0
  %vm235 = vcmask 15360
  %236 = vst.msk [vmem:[%s7] sm:$0xff] %vm235, %v232
  // Predicated region
  $region30: #{tpu_custom_call.1} parent=0 // pred_check
    _
  $region31: #{tpu_custom_call.1} parent=0 // pred_check_branch
    %238 = sbr.rel (0) target = $region33
  $region32: #{tpu_custom_call.1} parent=0 // pred_region
    _
  $region33: #{tpu_custom_call.1} parent=0 // pred_fallthru
    _
  // Predicated region
  $region34: #{tpu_custom_call.1} parent=0 // pred_check
    _
  $region35: #{tpu_custom_call.1} parent=0 // pred_check_branch
    %240 = sbr.rel (0) target = $region37
  $region36: #{tpu_custom_call.1} parent=0 // pred_region
    _
  $region37: #{tpu_custom_call.1} parent=0 // pred_fallthru
    _

</llo_original>
